<compile_context>
chip_gen: v7x
topology: tpu7x:2x2x1
jax: 0.10.0
libtpu: 0.0.40
codegen_flags: <defaults>
</compile_context>

<pallas_src>
import functools
import math

import jax
import jax.numpy as jnp
from jax import lax
from jax.experimental import pallas as pl
from jax.experimental.pallas import tpu as pltpu


def _round_up(x, m):
    return (x + m - 1) // m * m


def _vmem_capacity_bytes():
    try:
        cap = int(pltpu.get_tpu_info().vmem_capacity_bytes)
        if cap > 0:
            return cap
    except Exception:
        pass
    return 64 << 20  # conservative: v7x per-TensorCore VMEM


def _one_hot_vocab_limit(dtype):
    """Generation- and dtype-aware threshold for the one-hot MXU path."""
    kind = ""
    try:
        kind = jax.devices()[0].device_kind.lower()
    except Exception:
        pass
    limit = 1024 if "v5" in kind else 4096   # v5e MXU ~4.7x slower than v6e/v7x
    if jnp.dtype(dtype).itemsize >= 4:       # f32 MXU path is multi-pass / slower
        limit //= 2
    return limit


# --------------------------------------------------------------------------- kernels


def _one_hot_kernel(ids_ref, emb_ref, out_ref, *, scale):
    # ids_ref: (TB, 1) int32 VMEM tile of token ids for this block
    # emb_ref: (vocab, d_model) whole table, resident in VMEM (single copy)
    # out_ref: (TB, d_model) output tile
    tb = out_ref.shape[0]
    vocab = emb_ref.shape[0]
    ids = ids_ref[...]                                             # (TB, 1)
    vocab_iota = lax.broadcasted_iota(jnp.int32, (tb, vocab), 1)   # (TB, vocab)
    one_hot = (vocab_iota == ids).astype(emb_ref.dtype)            # (TB, vocab)
    rows = jnp.dot(one_hot, emb_ref[...], preferred_element_type=jnp.float32)
    out_ref[...] = (rows * scale).astype(out_ref.dtype)


def _vmem_gather_kernel(ids_ref, emb_ref, out_ref, *, scale, tb, unroll):
    # ids_ref: SMEM int32[N] scalar-prefetched (padded) token ids
    # emb_ref: (vocab, d_model) whole table, resident in VMEM (single copy)
    # out_ref: (TB, d_model) output tile
    base = pl.program_id(0) * tb
    n_groups = tb // 8

    def body(g, carry):
        off = pl.multiple_of(g * 8, 8)
        # Gather 8 rows, concatenate into a dense (8, d_model) block, one dense store.
        rows = [emb_ref[pl.ds(ids_ref[base + off + r], 1), :] for r in range(8)]
        block = jnp.concatenate(rows, axis=0).astype(jnp.float32)   # (8, d_model)
        out_ref[pl.ds(off, 8), :] = (block * scale).astype(out_ref.dtype)
        return carry

    lax.fori_loop(0, n_groups, body, 0, unroll=unroll)


def _hbm_gather_kernel(ids_ref, emb_hbm, out_ref, rows_vmem, sems, *,
                       scale, tb, ndma):
    # ids_ref:   SMEM int32[N] scalar-prefetched (padded) token ids
    # emb_hbm:   (vocab, d_model) table left in HBM (memory_space=pl.ANY)
    # out_ref:   (TB, d_model) output tile
    # rows_vmem: (TB, d_model) VMEM landing buffer for the gathered rows
    # sems:      DMA semaphores, one per outstanding copy
    base = pl.program_id(0) * tb

    def row_copy(t, slot):
        tok = ids_ref[base + t]
        return pltpu.make_async_copy(
            emb_hbm.at[pl.ds(tok, 1), :],
            rows_vmem.at[pl.ds(t, 1), :],
            sems.at[slot])

    # Prime the pipeline with up to `ndma` outstanding row DMAs.
    for t in range(min(ndma, tb)):
        row_copy(t, t).start()

    def body(t, carry):
        slot = t % ndma
        row_copy(t, slot).wait()

        @pl.when(t + ndma < tb)
        def _():
            row_copy(t + ndma, slot).start()

        return carry

    lax.fori_loop(0, tb, body, 0)
    # One whole-tile scale + cast (full vreg occupancy, single pass).
    out_ref[...] = (rows_vmem[...].astype(jnp.float32) * scale).astype(out_ref.dtype)


# --------------------------------------------------------------------------- wrapper


def token_embedding(tokens, emb_table, *, block_tokens=512, force_path=None):
    """Pallas equivalent of TokenEmbedding.forward.

    tokens:    (B, S) integer ids
    emb_table: (vocab_size, d_model) float
    returns:   (B, S, d_model) = emb_table[tokens] * sqrt(d_model)
    """
    vocab, d_model = emb_table.shape
    scale = float(math.sqrt(d_model))
    out_dtype = emb_table.dtype
    itemsize = jnp.dtype(emb_table.dtype).itemsize

    # nn.Embedding would raise on out-of-range ids; here they are clipped (documented).
    flat_ids = jnp.clip(tokens.reshape(-1).astype(jnp.int32), 0, vocab - 1)
    n_tokens = int(flat_ids.shape[0])

    cap = _vmem_capacity_bytes()

    # Token-block size: sublane-dense (multiple of 8), capped at block_tokens,
    # shrunk if the per-block buffers would eat too much of VMEM.
    tb = min(block_tokens, _round_up(max(n_tokens, 1), 8))
    tb = max(8, _round_up(tb, 8))
    while tb > 8 and (3 * tb * d_model * max(itemsize, 4)) > cap // 4:
        tb = max(8, _round_up(tb // 2, 8))

    n_padded = _round_up(max(n_tokens, 1), tb)
    pad = n_padded - n_tokens
    if pad:
        flat_ids = jnp.concatenate([flat_ids, jnp.zeros((pad,), jnp.int32)])
    n_blocks = n_padded // tb

    # ---- VMEM budgets per path (table counted ONCE: resident, not pipelined) ----
    slack = 4 << 20
    table_bytes = vocab * d_model * itemsize
    out_tile = tb * d_model * itemsize
    gathered_bytes = max(n_tokens, 1) * d_model * itemsize

    onehot_need = (table_bytes + 2 * out_tile + 2 * tb * 4
                   + tb * vocab * (itemsize + 4) + tb * d_model * 4 + slack)
    gvmem_need = table_bytes + 2 * out_tile + 8 * d_model * 4 + slack
    ghbm_need = 2 * out_tile + tb * d_model * itemsize + tb * d_model * 4 + slack

    path = force_path
    if path is None:
        if vocab <= _one_hot_vocab_limit(emb_table.dtype) and onehot_need <= int(cap * 0.8):
            path = "onehot"
        elif gvmem_need <= int(cap * 0.8) and table_bytes <= 8 * gathered_bytes:
            path = "gather_vmem"
        else:
            # Table is large relative to the tokens gathered (or doesn't fit VMEM):
            # read only O(n_tokens * d_model) from HBM via per-row DMA gather.
            path = "gather_hbm"

    need = {"onehot": onehot_need, "gather_vmem": gvmem_need, "gather_hbm": ghbm_need}[path]
    vmem_limit = int(min(max(need, 16 << 20), int(cap * 0.95)))

    compiler_params = pltpu.CompilerParams(
        dimension_semantics=("arbitrary",),   # avoid per-core table duplication on v7x
        vmem_limit_bytes=vmem_limit,
    )
    out_shape = jax.ShapeDtypeStruct((n_padded, d_model), out_dtype)
    resident_table_spec = pl.BlockSpec(memory_space=pltpu.MemorySpace.VMEM)

    if path == "onehot":
        ids2d = flat_ids.reshape(n_padded, 1)
        kernel = functools.partial(_one_hot_kernel, scale=scale)
        out_flat = pl.pallas_call(
            kernel,
            out_shape=out_shape,
            grid_spec=pltpu.PrefetchScalarGridSpec(
                num_scalar_prefetch=0,
                grid=(n_blocks,),
                in_specs=[
                    pl.BlockSpec((tb, 1), lambda i: (i, 0)),
                    resident_table_spec,
                ],
                out_specs=pl.BlockSpec((tb, d_model), lambda i: (i, 0)),
            ),
            compiler_params=compiler_params,
        )(ids2d, emb_table)

    elif path == "gather_vmem":
        unroll = min(8, max(1, tb // 8))
        kernel = functools.partial(_vmem_gather_kernel, scale=scale, tb=tb, unroll=unroll)
        out_flat = pl.pallas_call(
            kernel,
            out_shape=out_shape,
            grid_spec=pltpu.PrefetchScalarGridSpec(
                num_scalar_prefetch=1,
                grid=(n_blocks,),
                in_specs=[resident_table_spec],
                out_specs=pl.BlockSpec((tb, d_model), lambda i, ids: (i, 0)),
            ),
            compiler_params=compiler_params,
        )(flat_ids, emb_table)

    else:  # "gather_hbm"
        ndma = 8
        kernel = functools.partial(_hbm_gather_kernel, scale=scale, tb=tb, ndma=ndma)
        out_flat = pl.pallas_call(
            kernel,
            out_shape=out_shape,
            grid_spec=pltpu.PrefetchScalarGridSpec(
                num_scalar_prefetch=1,
                grid=(n_blocks,),
                in_specs=[pl.BlockSpec(memory_space=pl.ANY)],
                out_specs=pl.BlockSpec((tb, d_model), lambda i, ids: (i, 0)),
                scratch_shapes=[
                    pltpu.VMEM((tb, d_model), emb_table.dtype),
                    pltpu.SemaphoreType.DMA((ndma,)),
                ],
            ),
            compiler_params=compiler_params,
        )(flat_ids, emb_table)

    out_flat = out_flat[:n_tokens]
    return out_flat.reshape(*tokens.shape, d_model)


if __name__ == "__main__":
    # Small deterministic setup consistent with the module:
    #   d_model = 32, vocabulary_size = 64, tokens shape = (batch=2, seq=8)
    d_model = 32
    vocabulary_size = 64
    batch, seq = 2, 8

    key = jax.random.PRNGKey(0)
    k_emb, k_tok = jax.random.split(key)

    # nn.Embedding default init ~ N(0, 1)
    emb_table = jax.random.normal(k_emb, (vocabulary_size, d_model), dtype=jnp.float32)
    tokens = jax.random.randint(k_tok, (batch, seq), 0, vocabulary_size, dtype=jnp.int32)

    ref = emb_table[tokens] * math.sqrt(d_model)

    # Default path for this config: VMEM-resident table + one-hot MXU matmul.
    out = jax.block_until_ready(token_embedding(tokens, emb_table))
    assert out.shape == (batch, seq, d_model)
    assert jnp.allclose(out, ref, atol=1e-4), "one-hot path mismatch vs reference"

    # VMEM-resident table + 8-row batched in-kernel gather.
    out_gv = jax.block_until_ready(
        token_embedding(tokens, emb_table, force_path="gather_vmem"))
    assert jnp.allclose(out_gv, ref, atol=1e-4), "gather_vmem path mismatch vs reference"

    # HBM-resident table + per-row DMA gather (the large-table path).
    out_gh = jax.block_until_ready(
        token_embedding(tokens, emb_table, force_path="gather_hbm"))
    assert jnp.allclose(out_gh, ref, atol=1e-4), "gather_hbm path mismatch vs reference"

    print("KERNEL_OK")
</pallas_src>

<mosaic_0001>
module attributes {stable_mosaic.version = 11 : i64} {
  func.func @_one_hot_kernel(%arg0: i32, %arg1: memref<16x1xi32, #tpu.memory_space<vmem>>, %arg2: memref<64x32xf32, #tpu.memory_space<vmem>>, %arg3: memref<16x32xf32, #tpu.memory_space<vmem>>) attributes {dimension_semantics = [#tpu.dimension_semantics<arbitrary>], iteration_bounds = array<i64: 1>, scalar_prefetch = 0 : i64, scratch_operands = 0 : i64, tpu.core_type = #tpu.core_type<tc>, window_params = [{transform_indices = @transform_0, window_bounds = array<i64: 16, 1>}, {pipeline_mode = #tpu.pipeline_mode<synchronous>, transform_indices = @transform_1, window_bounds = array<i64: 64, 32>}, {transform_indices = @transform_2, window_bounds = array<i64: 16, 32>}]} {
    %c0 = arith.constant 0 : index
    %c0_0 = arith.constant 0 : index
    %0 = vector.load %arg1[%c0, %c0_0] : memref<16x1xi32, #tpu.memory_space<vmem>>, vector<16x1xi32>
    %1 = tpu.iota {dimensions = array<i32: 1>} : vector<16x64xi32>
    %2 = vector.broadcast %0 : vector<16x1xi32> to vector<16x64xi32>
    %3 = arith.cmpi eq, %1, %2 : vector<16x64xi32>
    %4 = arith.extui %3 : vector<16x64xi1> to vector<16x64xi32>
    %5 = arith.sitofp %4 : vector<16x64xi32> to vector<16x64xf32>
    %c0_1 = arith.constant 0 : index
    %c0_2 = arith.constant 0 : index
    %6 = vector.load %arg2[%c0_1, %c0_2] : memref<64x32xf32, #tpu.memory_space<vmem>>, vector<64x32xf32>
    %cst = arith.constant dense<0.000000e+00> : vector<16x32xf32>
    %7 = tpu.matmul %5, %6, %cst {dimension_numbers = #tpu.dot_dimension_numbers<[1], [0], [0], [1], [0, 0, 1, 1], [], []>} : vector<16x64xf32>, vector<64x32xf32>, vector<16x32xf32> -> vector<16x32xf32>
    %cst_3 = arith.constant 5.65685415 : f32
    %8 = vector.broadcast %cst_3 : f32 to vector<16x32xf32>
    %9 = arith.mulf %7, %8 : vector<16x32xf32>
    %c0_4 = arith.constant 0 : index
    %c0_5 = arith.constant 0 : index
    %10 = vector.load %arg3[%c0_4, %c0_5] : memref<16x32xf32, #tpu.memory_space<vmem>>, vector<16x32xf32>
    tpu.vector_store %arg3[%c0_4, %c0_5], %9 {strides = array<i32>} : memref<16x32xf32, #tpu.memory_space<vmem>>, vector<16x32xf32>,
    return
  }
  func.func @transform_0(%arg0: i32) -> (i32, i32) {
    %c0_i32 = arith.constant 0 : i32
    %c0_i32_0 = arith.constant 0 : i32
    return %arg0, %c0_i32 : i32, i32
  }
  func.func @transform_1(%arg0: i32) -> (i32, i32) {
    %c0_i32 = arith.constant 0 : i32
    %c0_i32_0 = arith.constant 0 : i32
    %c0_i32_1 = arith.constant 0 : i32
    return %c0_i32, %c0_i32_0 : i32, i32
  }
  func.func @transform_2(%arg0: i32) -> (i32, i32) {
    %c0_i32 = arith.constant 0 : i32
    %c0_i32_0 = arith.constant 0 : i32
    return %arg0, %c0_i32 : i32, i32
  }
}

</mosaic_0001>

<llo_original>
// kernel: tpu_custom_call.1
$region0: #{tpu_custom_call.1}
  #allocation0 [shape = 'u32[]', space=smem, size = 0x4, offset = 0x4, fixed_abs, tag = 'smem constant byte address 0x4 - core index']
  #allocation1 [shape = 'u32[144,128]{1,0:T(1,128)}', space=vmem, size = 0x12000, scoped, tag = 'internal scratch']
  %s0 = inlined_call_operand.vmem [shape: s32[16,1], index: 0, kind: input, shape index: {}]
  %s1 = inlined_call_operand.vmem [shape: f32[64,32], index: 1, kind: input, shape index: {}]
  %s2 = inlined_call_operand.hbm [shape: f32[16,32], index: 2, kind: output, shape index: {}]
  %s3 = sld [smem:[#allocation0]]
  $region18: #{tpu_custom_call.1} parent=0
    _
  %s5 = ssub.s32 1, %s3
  %s6 = scalar_select 0, %s5, %s3
  $region1: #{tpu_custom_call.1} parent=0
    #allocation2 [shape = 'u8[8192]{0}', space=vmem, size = 0x2000, scoped, tag = 'output window, operand 0, single buffered']
    #allocation3 [shape = 's32[1]{0}', space=sflag, size = 0x4, scoped, tag = 'scoped memory for tpu_custom_call.1']
    %7 = vsyncpa [#allocation3], 0
    // Predicated region
    $region2: #{tpu_custom_call.1} parent=1 // pred_check
      _
    $region3: #{tpu_custom_call.1} parent=1 // pred_check_branch
      %9 = sbr.rel (0) target = $region5
    $region4: #{tpu_custom_call.1} parent=1 // pred_region
      _
    $region5: #{tpu_custom_call.1} parent=1 // pred_fallthru
      _
    // Predicated region
    $region6: #{tpu_custom_call.1} parent=1 // pred_check
      _
    $region7: #{tpu_custom_call.1} parent=1 // pred_check_branch
      %11 = sbr.rel (0) target = $region9
    $region8: #{tpu_custom_call.1} parent=1 // pred_region
      _
    $region9: #{tpu_custom_call.1} parent=1 // pred_fallthru
      _
    %v12 = vld [vmem:[%s0] sm:$0xff]
    %v13 = vld [vmem:[%s0 + $0x8] sm:$0xff]
    %v14 = vlaneseq
    %v15 = vand.u32 %v14, 127
    %16 = vset.pattern.permute.xlu0 0
    %17 = vperm.xlu0 %16, %v12
    %v18 = vpop.permute.xlu0 %17
    %19 = vset.pattern.permute.xlu0 0
    %20 = vperm.xlu0 %19, %v13
    %v21 = vpop.permute.xlu0 %20
    %vm22 = vcmp.eq.s32.totalorder %v15, %v18
    %vm23 = vcmp.eq.s32.totalorder %v15, %v21
    %v24 = vsel %vm22, 1, 0
    %v25 = vsel %vm23, 1, 0
    %v26 = vcvt.s32.f32 %v24
    %v27 = vcvt.s32.f32 %v25
    %v28 = vld [vmem:[%s1] sm:$0xff]
    %v29 = vld [vmem:[%s1 + $0x8] sm:$0xff]
    %v30 = vld [vmem:[%s1 + $0x10] sm:$0xff]
    %v31 = vld [vmem:[%s1 + $0x18] sm:$0xff]
    %v32 = vld [vmem:[%s1 + $0x20] sm:$0xff]
    %v33 = vld [vmem:[%s1 + $0x28] sm:$0xff]
    %v34 = vld [vmem:[%s1 + $0x30] sm:$0xff]
    %v35 = vld [vmem:[%s1 + $0x38] sm:$0xff]
    %vm36 = vcmask 523264
    %v38 = vsel %vm36, %v26, 0
    %v41 = vsel %vm36, %v27, 0
    %43 = vmatprep.subr.mxu0 0.0
    %44 = vmatpush1.msra.mxu0 %v28
    %45 = vmatprep.subr.mxu0 0.0
    %46 = vmatpush1.msra.mxu0 %v29
    %47 = vmatprep.subr.mxu0 0.0
    %48 = vmatpush1.msra.mxu0 %v30
    %49 = vmatprep.subr.mxu0 0.0
    %50 = vmatpush1.msra.mxu0 %v31
    %51 = vmatprep.subr.mxu0 0.0
    %52 = vmatpush1.msra.mxu0 %v32
    %53 = vmatprep.subr.mxu0 0.0
    %54 = vmatpush1.msra.mxu0 %v33
    %55 = vmatprep.subr.mxu0 0.0
    %56 = vmatpush1.msra.mxu0 %v34
    %57 = vmatprep.subr.mxu0 0.0
    %58 = vmatpush1.msra.mxu0 %v35
    %59 = vmatprep.subr.mxu0 0.0
    %60 = vmatpush1.msra.mxu0 0.0
    %61 = vmatprep.subr.mxu0 0.0
    %62 = vmatpush1.msra.mxu0 0.0
    %63 = vmatprep.subr.mxu0 0.0
    %64 = vmatpush1.msra.mxu0 0.0
    %65 = vmatprep.subr.mxu0 0.0
    %66 = vmatpush1.msra.mxu0 0.0
    %67 = vmatprep.subr.mxu0 0.0
    %68 = vmatpush1.msra.mxu0 0.0
    %69 = vmatprep.subr.mxu0 0.0
    %70 = vmatpush1.msra.mxu0 0.0
    %71 = vmatprep.subr.mxu0 0.0
    %72 = vmatpush1.msra.mxu0 0.0
    %73 = vmatprep.subr.mxu0 0.0
    %74 = vmatpush1.msra.mxu0 0.0
    %75 = vmatprep.subr.mxu0 0.0
    %76 = vmatpush1.msra.mxu0 0.0
    %77 = vmatprep.subr.mxu0 0.0
    %78 = vmatpush1.msra.mxu0 0.0
    %79 = vmatprep.subr.mxu0 0.0
    %80 = vmatpush1.msra.mxu0 0.0
    %81 = vmatprep.subr.mxu0 0.0
    %82 = vmatpush1.msra.mxu0 0.0
    %83 = vmatprep.subr.mxu0 0.0
    %84 = vmatpush1.msra.mxu0 0.0
    %85 = vmatprep.subr.mxu0 0.0
    %86 = vmatpush1.msra.mxu0 0.0
    %87 = vmatprep.subr.mxu0 0.0
    %88 = vmatpush1.msra.mxu0 0.0
    %89 = vmatprep.subr.mxu0 0.0
    %90 = vmatpush1.msra.mxu0 0.0
    %91 = vmatprep.subr.mxu0 0.0
    %92 = vmatpush1.msra.mxu0 0.0
    %93 = vmatprep.subr.mxu0 0.0
    %94 = vmatpush1.msra.mxu0 0.0
    %95 = vmatprep.subr.mxu0 0.0
    %96 = vmatpush1.msra.mxu0 0.0
    %97 = vmatprep.subr.mxu0 0.0
    %98 = vmatpush1.msra.mxu0 0.0
    %99 = vmatprep.subr.mxu0 0.0
    %100 = vmatpush1.msra.mxu0 0.0
    %101 = vmatprep.subr.mxu0 0.0
    %102 = vmatpush1.msra.mxu0 0.0
    %103 = vmatprep.subr.mxu0 0.0
    %104 = vmatpush1.msra.mxu0 0.0
    %105 = vmatprep.subr.mxu0 0.0
    %106 = vmatpush1.msra.mxu0 0.0
    %107 = vmatprep.mubr.f32.mxu0 0.0
    %108 = vmatmul.mubr.f32.gmra.mrb[0].mxu0 %v38
    %v109 = vpop.f32.mrb[0].mxu0
    %v110 = vadd.f32 0.0, %v109
    %v111 = vpop.f32.mrb[0].mxu0
    %112 = vmatprep.mubr.f32.mxu0 0.0
    %113 = vmatmul.mubr.f32.gmra.mrb[0].mxu0 %v41
    %v114 = vpop.f32.mrb[0].mxu0
    %v115 = vadd.f32 0.0, %v114
    %v116 = vpop.f32.mrb[0].mxu0
    %117 = vdwg.mxu0
    %v118 = vmul.f32 %v110, 5.656854
    %v119 = vmul.f32 %v115, 5.656854
    %vm120 = vcmask 261120
    %121 = vst.msk [vmem:[#allocation2] sm:$0xff] %vm120, %v118
    %122 = vst.msk [vmem:[#allocation2 + $0x8] sm:$0xff] %vm120, %v119
    // Predicated region
    $region10: #{tpu_custom_call.1} parent=1 // pred_check
      _
    $region11: #{tpu_custom_call.1} parent=1 // pred_check_branch
      %124 = sbr.rel (0) target = $region13
    $region12: #{tpu_custom_call.1} parent=1 // pred_region
      %s126 = ssub.s32 256, 256
      %127 = vsyncadd [#allocation3], %s126
      %s128 = sshll.u32 [#allocation2], 4
      %s129 = int_to_ptr.vmem [resolvable:$true] %s128
      %134 = dma.vmem_to_hbm [thread:$0]  %s129, 256, %s2, [#allocation3], 128, 128, 8
    $region13: #{tpu_custom_call.1} parent=1 // pred_fallthru
      _
    // Predicated region
    $region14: #{tpu_custom_call.1} parent=1 // pred_check
      _
    $region15: #{tpu_custom_call.1} parent=1 // pred_check_branch
      %136 = sbr.rel (0) target = $region17
    $region16: #{tpu_custom_call.1} parent=1 // pred_region
      %137 = dma.done [#allocation3], 256
    $region17: #{tpu_custom_call.1} parent=1 // pred_fallthru
      _
    %138 = vsyncpa [#allocation3], 1

</llo_original>
